<compile_context>
chip_gen: v7x
topology: tpu7x:2x2x1
jax: 0.10.0
libtpu: 0.0.40
codegen_flags: <defaults>
</compile_context>

<pallas_src>
import functools
import math

import jax
import jax.numpy as jnp
from jax.experimental import pallas as pl
from jax.experimental.pallas import tpu as pltpu


# ---------------------------------------------------------------------------
# Small helpers
# ---------------------------------------------------------------------------
@functools.lru_cache(maxsize=None)
def _vmem_limit_bytes():
    """Per-generation scoped-VMEM budget: <= half of physical VMEM, capped at
    48 MiB (so 48 MiB on 128 MiB v5e/v6e, 32 MiB on 64 MiB v7x)."""
    cap_default = 48 * 1024 * 1024
    try:
        info = pltpu.get_tpu_info()
        cap = getattr(info, "vmem_capacity_bytes", None)
        if cap:
            return int(min(cap // 2, cap_default))
    except Exception:
        pass
    return 32 * 1024 * 1024   # safe on every generation


def _pick_tile(dim, target, align):
    """Largest `align`-aligned divisor of `dim` that is <= target; the full
    dimension if dim <= target.  Only falls back to the full dimension when no
    aligned divisor exists (small/odd dims), instead of silently picking a
    huge block."""
    if dim <= target:
        return dim
    t = (min(target, dim) // align) * align
    while t >= align:
        if dim % t == 0:
            return t
        t -= align
    return dim


# ---------------------------------------------------------------------------
# Tiled, pipelined linear kernel:  (M, K) @ (K, N) -> (M, N)
# ---------------------------------------------------------------------------
def _matmul_kernel(x_ref, w_ref, o_ref, acc_ref):
    @pl.when(pl.program_id(2) == 0)
    def _():
        acc_ref[...] = jnp.zeros_like(acc_ref)

    acc_ref[...] += jnp.dot(x_ref[...], w_ref[...],
                            preferred_element_type=jnp.float32)

    @pl.when(pl.program_id(2) == pl.num_programs(2) - 1)
    def _():
        o_ref[...] = acc_ref[...].astype(o_ref.dtype)


def _matmul_kernel_single_k(x_ref, w_ref, o_ref):
    # Whole reduction fits one grid step: skip the f32 accumulator round-trip.
    o_ref[...] = jnp.dot(x_ref[...], w_ref[...],
                         preferred_element_type=jnp.float32).astype(o_ref.dtype)


def pallas_linear(x2d, w_t, *, out_dtype, tm=512, tn=256, tk=512):
    """x2d: (M, K), w_t: (K, N) -> (M, N); f32 accumulation on the MXU."""
    M, K = x2d.shape
    _, N = w_t.shape
    tm = _pick_tile(M, tm, 8)     # sublane dim of x / out blocks
    tn = _pick_tile(N, tn, 128)   # lane dim of w / out blocks
    tk = _pick_tile(K, tk, 128)   # lane dim of x, sublane dim of w
    vmem_limit = _vmem_limit_bytes()

    if K // tk == 1:
        return pl.pallas_call(
            _matmul_kernel_single_k,
            out_shape=jax.ShapeDtypeStruct((M, N), out_dtype),
            grid_spec=pltpu.PrefetchScalarGridSpec(
                num_scalar_prefetch=0,
                grid=(M // tm, N // tn),
                in_specs=[pl.BlockSpec((tm, K), lambda i, j: (i, 0)),
                          pl.BlockSpec((K, tn), lambda i, j: (0, j))],
                out_specs=pl.BlockSpec((tm, tn), lambda i, j: (i, j)),
            ),
            compiler_params=pltpu.CompilerParams(
                dimension_semantics=("parallel", "parallel"),
                vmem_limit_bytes=vmem_limit),
        )(x2d, w_t)

    return pl.pallas_call(
        _matmul_kernel,
        out_shape=jax.ShapeDtypeStruct((M, N), out_dtype),
        grid_spec=pltpu.PrefetchScalarGridSpec(
            num_scalar_prefetch=0,
            grid=(M // tm, N // tn, K // tk),
            in_specs=[pl.BlockSpec((tm, tk), lambda i, j, k: (i, k)),
                      pl.BlockSpec((tk, tn), lambda i, j, k: (k, j))],
            out_specs=pl.BlockSpec((tm, tn), lambda i, j, k: (i, j)),
            scratch_shapes=[pltpu.VMEM((tm, tn), jnp.float32)],
        ),
        compiler_params=pltpu.CompilerParams(
            dimension_semantics=("parallel", "parallel", "arbitrary"),
            vmem_limit_bytes=vmem_limit),
    )(x2d, w_t)


# ---------------------------------------------------------------------------
# Flash-style attention kernel.  Grid = (B, H, Sq//tq, Sk//tkv).
# All refs arrive head-sliced:  q (tq, Hd), k/v (tkv, Hd), mask (tq, tkv).
# ---------------------------------------------------------------------------
def _flash_attention_kernel(vl_ref, q_ref, k_ref, v_ref, *rest,
                            mask_mode, compute_dtype, approx_recip):
    if mask_mode == "bool":
        mask_ref, o_ref, m_ref, l_ref, acc_ref = rest
    else:
        o_ref, m_ref, l_ref, acc_ref = rest

    b = pl.program_id(0)
    ki = pl.program_id(3)
    nk = pl.num_programs(3)
    tq, _ = q_ref.shape
    tkv = k_ref.shape[0]

    @pl.when(ki == 0)
    def _():
        m_ref[...] = jnp.full_like(m_ref, -jnp.inf)
        l_ref[...] = jnp.zeros_like(l_ref)
        acc_ref[...] = jnp.zeros_like(acc_ref)

    if mask_mode == "valid_len":
        vl = vl_ref[b]

    def update():
        # q is already scaled by 1/sqrt(head_dim) (folded into W_q).
        # Contract last dims directly (no k transpose -> no XLU relayout).
        s = jax.lax.dot_general(
            q_ref[...], k_ref[...],
            dimension_numbers=(((1,), (1,)), ((), ())),
            preferred_element_type=jnp.float32)                 # (tq, tkv)

        if mask_mode == "valid_len":
            col = jax.lax.broadcasted_iota(jnp.int32, (tq, tkv), 1) + ki * tkv
            s = jnp.where(col >= vl, -1000000.0, s)
        elif mask_mode == "bool":
            s = jnp.where(mask_ref[...] != 0, -1000000.0, s)

        m_prev = m_ref[...]
        m_new = jnp.maximum(m_prev, jnp.max(s, axis=-1, keepdims=True))
        alpha = jnp.exp(m_prev - m_new)
        p = jnp.exp(s - m_new)                                  # f32
        l_ref[...] = alpha * l_ref[...] + jnp.sum(p, axis=-1, keepdims=True)
        acc_ref[...] = alpha * acc_ref[...] + jnp.dot(
            p.astype(compute_dtype), v_ref[...],
            preferred_element_type=jnp.float32)
        m_ref[...] = m_new

    if mask_mode == "valid_len":
        # Skip fully padded KV tiles (exp(-1e6 - m) flushes to 0, so this is
        # numerically identical).  vl == 0 must still process everything so
        # the reference's uniform-softmax behavior is preserved.
        pl.when(jnp.logical_or(ki * tkv < vl, vl == 0))(update)
    else:
        update()

    @pl.when(ki == nk - 1)
    def _():
        inv_l = pl.reciprocal(l_ref[...], approx=approx_recip)
        o_ref[...] = (acc_ref[...] * inv_l).astype(o_ref.dtype)


def _clamp_kv_index(ki, vl, tkv, nk):
    """Last KV tile containing any valid key (no clamp when vl == 0, which
    must keep processing/fetching all tiles)."""
    last = jnp.where(vl > 0, (vl - 1) // tkv, nk - 1)
    return jnp.minimum(ki, last)


def pallas_mha_attention(q, k, v, *, num_heads, valid_len=None, bool_mask=None,
                         compute_dtype=jnp.bfloat16,
                         tq_target=256, tkv_target=256):
    """q: (B, Sq, D), k/v: (B, Sk, D).  Returns (B, Sq, D) with heads merged
    in the same column order as the PyTorch transpose_output."""
    B, Sq, D = q.shape
    Sk = k.shape[1]
    assert D % num_heads == 0
    H, Hd = num_heads, D // num_heads

    if bool_mask is not None:
        mask_mode = "bool"
        mask = jnp.asarray(bool_mask).astype(jnp.int8).reshape(B, H, Sq, Sk)
        vl = jnp.zeros((B,), jnp.int32)               # unused
    elif valid_len is not None:
        mask_mode = "valid_len"
        mask = None
        vl = jnp.asarray(valid_len).reshape(-1).astype(jnp.int32)
        assert vl.shape[0] == B, "valid_len must be (B,) or (B, 1)"
    else:
        mask_mode = "none"
        mask = None
        vl = jnp.zeros((B,), jnp.int32)               # unused

    tq = _pick_tile(Sq, tq_target, 8)
    tkv = _pick_tile(Sk, tkv_target, 128 if mask_mode == "bool" else 8)
    nq, nk = Sq // tq, Sk // tkv

    # Layout: per-head blocks.  If head_dim is lane aligned we slice heads out
    # of (B, S, D) directly with the index_map (no transposes).  Otherwise use
    # a (B, H, S, Hd) layout so Hd is the full trailing dim of every block.
    lane_heads = (Hd % 128 == 0)

    if lane_heads:
        q_in, k_in, v_in = q, k, v

        q_spec = pl.BlockSpec((None, tq, Hd),
                              lambda b, h, qi, ki, vl_ref: (b, qi, h))

        def kv_index(b, h, qi, ki, vl_ref):
            if mask_mode == "valid_len":
                ki = _clamp_kv_index(ki, vl_ref[b], tkv, nk)
            return (b, ki, h)

        kv_spec = pl.BlockSpec((None, tkv, Hd), kv_index)
        out_spec = pl.BlockSpec((None, tq, Hd),
                                lambda b, h, qi, ki, vl_ref: (b, qi, h))
        out_shape = jax.ShapeDtypeStruct((B, Sq, D), compute_dtype)
    else:
        def to_bhsd(x):
            s = x.shape[1]
            return jnp.transpose(x.reshape(B, s, H, Hd), (0, 2, 1, 3))

        q_in, k_in, v_in = to_bhsd(q), to_bhsd(k), to_bhsd(v)

        q_spec = pl.BlockSpec((None, None, tq, Hd),
                              lambda b, h, qi, ki, vl_ref: (b, h, qi, 0))

        def kv_index(b, h, qi, ki, vl_ref):
            if mask_mode == "valid_len":
                ki = _clamp_kv_index(ki, vl_ref[b], tkv, nk)
            return (b, h, ki, 0)

        kv_spec = pl.BlockSpec((None, None, tkv, Hd), kv_index)
        out_spec = pl.BlockSpec((None, None, tq, Hd),
                                lambda b, h, qi, ki, vl_ref: (b, h, qi, 0))
        out_shape = jax.ShapeDtypeStruct((B, H, Sq, Hd), compute_dtype)

    in_specs = [q_spec, kv_spec, kv_spec]
    args = [q_in, k_in, v_in]
    if mask_mode == "bool":
        in_specs.append(pl.BlockSpec((None, None, tq, tkv),
                                     lambda b, h, qi, ki, vl_ref: (b, h, qi, ki)))
        args.append(mask)

    kernel = functools.partial(
        _flash_attention_kernel,
        mask_mode=mask_mode, compute_dtype=compute_dtype,
        approx_recip=(compute_dtype == jnp.bfloat16))

    out = pl.pallas_call(
        kernel,
        out_shape=out_shape,
        grid_spec=pltpu.PrefetchScalarGridSpec(
            num_scalar_prefetch=1,
            grid=(B, H, nq, nk),
            in_specs=in_specs,
            out_specs=out_spec,
            scratch_shapes=[pltpu.VMEM((tq, 1), jnp.float32),    # running max
                            pltpu.VMEM((tq, 1), jnp.float32),    # running denom
                            pltpu.VMEM((tq, Hd), jnp.float32)],  # accumulator
        ),
        compiler_params=pltpu.CompilerParams(
            dimension_semantics=("parallel", "parallel", "parallel", "arbitrary"),
            vmem_limit_bytes=_vmem_limit_bytes()),
    )(vl, *args)

    if not lane_heads:
        out = jnp.transpose(out, (0, 2, 1, 3)).reshape(B, Sq, D)
    return out


# ---------------------------------------------------------------------------
# Full MultiHeadAttention forward (mirrors the PyTorch module, eval mode).
# ---------------------------------------------------------------------------
def prepare_params(params, num_heads, compute_dtype=jnp.bfloat16):
    """One-time parameter prep: transpose (out,in)->(in,out), cast to the MXU
    compute dtype, and fold 1/sqrt(head_dim) into W_q."""
    W_q, W_k, W_v, W_o = params
    d_model = W_q.shape[0]
    scale = 1.0 / math.sqrt(d_model // num_heads)
    WqT = (jnp.asarray(W_q).T * scale).astype(compute_dtype)
    WkT = jnp.asarray(W_k).T.astype(compute_dtype)
    WvT = jnp.asarray(W_v).T.astype(compute_dtype)
    WoT = jnp.asarray(W_o).T.astype(compute_dtype)
    return (WqT, WkT, WvT, WoT)


def multi_head_attention(queries, keys, values, params_t, num_heads,
                         valid_len=None, is_causal_scenario=False,
                         compute_dtype=jnp.bfloat16):
    """params_t: output of prepare_params.  If is_causal_scenario, `valid_len`
    is a boolean mask tensor of shape (B*num_heads, Sq, Sk) (True = masked),
    exactly like the PyTorch interface."""
    WqT, WkT, WvT, WoT = params_t
    B, Sq, D = queries.shape
    out_dtype = queries.dtype

    def proj(x, WT):
        y = pallas_linear(x.reshape(-1, D).astype(compute_dtype), WT,
                          out_dtype=compute_dtype)
        return y.reshape(x.shape[0], x.shape[1], D)

    # TODO(synk): for self-attention (queries is keys is values) the three
    # projections could be fused into one (D, 3D) matmul; skipped because
    # slicing the fused output back into q/k/v costs an extra HBM round trip
    # that cancels the saved activation reads unless the attention kernel
    # consumes the packed tensor directly.
    q = proj(queries, WqT)     # 1/sqrt(head_dim) already folded into WqT
    k = proj(keys, WkT)
    v = proj(values, WvT)

    bool_mask = valid_len if is_causal_scenario else None
    vl = None if is_causal_scenario else valid_len

    attn = pallas_mha_attention(q, k, v, num_heads=num_heads,
                                valid_len=vl, bool_mask=bool_mask,
                                compute_dtype=compute_dtype)

    # Heads merged in (B, Sq, D) column order -> feed W_o directly.
    out = pallas_linear(attn.reshape(-1, D), WoT, out_dtype=out_dtype)
    return out.reshape(B, Sq, D)


# ---------------------------------------------------------------------------
# Pure-JAX reference (direct transcription of the PyTorch forward).
# ---------------------------------------------------------------------------
def reference_mha(queries, keys, values, params, num_heads,
                  valid_len=None, causal_mask=None):
    W_q, W_k, W_v, W_o = params
    B, Sq, D = queries.shape
    Sk = keys.shape[1]
    Hd = D // num_heads

    def split(x):
        S = x.shape[1]
        x = x.reshape(B, S, num_heads, Hd)
        return jnp.transpose(x, (0, 2, 1, 3)).reshape(B * num_heads, S, Hd)

    q = split(queries @ W_q.T)
    k = split(keys @ W_k.T)
    v = split(values @ W_v.T)

    scores = jnp.einsum("bqd,bkd->bqk", q, k) / math.sqrt(Hd)
    if causal_mask is not None:
        scores = jnp.where(causal_mask, -1000000.0, scores)
    elif valid_len is not None:
        vlr = jnp.repeat(valid_len.reshape(B), num_heads)
        col = jnp.arange(Sk)[None, None, :]
        scores = jnp.where(col >= vlr[:, None, None], -1000000.0, scores)
    w = jax.nn.softmax(scores, axis=-1)
    o = jnp.einsum("bqk,bkd->bqd", w, v)
    o = o.reshape(B, num_heads, Sq, Hd)
    o = jnp.transpose(o, (0, 2, 1, 3)).reshape(B, Sq, D)
    return o @ W_o.T


if __name__ == "__main__":
    B, S, D, H = 2, 8, 32, 4      # batch, seq, d_model, num_heads (head_dim=8)

    key = jax.random.PRNGKey(0)
    k1, k2, k3, k4, k5, k6, k7 = jax.random.split(key, 7)
    scale = 1.0 / math.sqrt(D)
    W_q = jax.random.normal(k1, (D, D), jnp.float32) * scale
    W_k = jax.random.normal(k2, (D, D), jnp.float32) * scale
    W_v = jax.random.normal(k3, (D, D), jnp.float32) * scale
    W_o = jax.random.normal(k4, (D, D), jnp.float32) * scale
    params = (W_q, W_k, W_v, W_o)

    queries = jax.random.normal(k5, (B, S, D), jnp.float32)
    keys_ = jax.random.normal(k6, (B, S, D), jnp.float32)
    values = jax.random.normal(k7, (B, S, D), jnp.float32)
    valid_len = jnp.array([5, 3], dtype=jnp.int32)

    # --- (1) f32 compute path, key-padding (valid_len) mask -----------------
    params_f32 = prepare_params(params, H, jnp.float32)
    out32 = multi_head_attention(queries, keys_, values, params_f32, H,
                                 valid_len=valid_len,
                                 compute_dtype=jnp.float32)
    out32 = jax.block_until_ready(out32)
    ref = reference_mha(queries, keys_, values, params, H, valid_len=valid_len)
    assert out32.shape == (B, S, D), out32.shape
    assert jnp.allclose(out32, ref, atol=5e-2, rtol=5e-2), \
        float(jnp.max(jnp.abs(out32 - ref)))

    # --- (2) f32 compute path, boolean causal mask (is_causal_scenario) -----
    causal = jnp.triu(jnp.ones((S, S), dtype=bool), k=1)
    causal_be = jnp.broadcast_to(causal, (B * H, S, S))
    out_c = multi_head_attention(queries, keys_, values, params_f32, H,
                                 valid_len=causal_be, is_causal_scenario=True,
                                 compute_dtype=jnp.float32)
    out_c = jax.block_until_ready(out_c)
    ref_c = reference_mha(queries, keys_, values, params, H,
                          causal_mask=causal_be)
    assert jnp.allclose(out_c, ref_c, atol=5e-2, rtol=5e-2), \
        float(jnp.max(jnp.abs(out_c - ref_c)))

    # --- (3) bf16 fast path (MXU bf16 inputs, f32 accumulation) -------------
    params_bf16 = prepare_params(params, H, jnp.bfloat16)
    out_bf = multi_head_attention(queries, keys_, values, params_bf16, H,
                                  valid_len=valid_len,
                                  compute_dtype=jnp.bfloat16)
    out_bf = jax.block_until_ready(out_bf)
    assert jnp.allclose(out_bf, ref, atol=1.5e-1, rtol=1.5e-1), \
        float(jnp.max(jnp.abs(out_bf - ref)))

    print("KERNEL_OK")
</pallas_src>

<mosaic_0001>
module attributes {stable_mosaic.version = 11 : i64} {
  func.func @_matmul_kernel_single_k(%arg0: i32, %arg1: i32, %arg2: memref<16x32xf32, #tpu.memory_space<vmem>>, %arg3: memref<32x32xf32, #tpu.memory_space<vmem>>, %arg4: memref<16x32xf32, #tpu.memory_space<vmem>>) attributes {dimension_semantics = [#tpu.dimension_semantics<parallel>, #tpu.dimension_semantics<parallel>], iteration_bounds = array<i64: 1, 1>, scalar_prefetch = 0 : i64, scratch_operands = 0 : i64, tpu.core_type = #tpu.core_type<tc>, window_params = [{transform_indices = @transform_0, window_bounds = array<i64: 16, 32>}, {transform_indices = @transform_1, window_bounds = array<i64: 32, 32>}, {transform_indices = @transform_2, window_bounds = array<i64: 16, 32>}]} {
    %c0 = arith.constant 0 : index
    %c0_0 = arith.constant 0 : index
    %0 = vector.load %arg2[%c0, %c0_0] : memref<16x32xf32, #tpu.memory_space<vmem>>, vector<16x32xf32>
    %c0_1 = arith.constant 0 : index
    %c0_2 = arith.constant 0 : index
    %1 = vector.load %arg3[%c0_1, %c0_2] : memref<32x32xf32, #tpu.memory_space<vmem>>, vector<32x32xf32>
    %cst = arith.constant dense<0.000000e+00> : vector<16x32xf32>
    %2 = tpu.matmul %0, %1, %cst {dimension_numbers = #tpu.dot_dimension_numbers<[1], [0], [0], [1], [0, 0, 1, 1], [], []>} : vector<16x32xf32>, vector<32x32xf32>, vector<16x32xf32> -> vector<16x32xf32>
    %c0_3 = arith.constant 0 : index
    %c0_4 = arith.constant 0 : index
    %3 = vector.load %arg4[%c0_3, %c0_4] : memref<16x32xf32, #tpu.memory_space<vmem>>, vector<16x32xf32>
    tpu.vector_store %arg4[%c0_3, %c0_4], %2 {strides = array<i32>} : memref<16x32xf32, #tpu.memory_space<vmem>>, vector<16x32xf32>,
    return
  }
  func.func @transform_0(%arg0: i32, %arg1: i32) -> (i32, i32) {
    %c0_i32 = arith.constant 0 : i32
    %c0_i32_0 = arith.constant 0 : i32
    return %arg0, %c0_i32 : i32, i32
  }
  func.func @transform_1(%arg0: i32, %arg1: i32) -> (i32, i32) {
    %c0_i32 = arith.constant 0 : i32
    %c0_i32_0 = arith.constant 0 : i32
    return %c0_i32, %arg1 : i32, i32
  }
  func.func @transform_2(%arg0: i32, %arg1: i32) -> (i32, i32) {
    %c0_i32 = arith.constant 0 : i32
    return %arg0, %arg1 : i32, i32
  }
}

</mosaic_0001>

<llo_original>
// kernel: tpu_custom_call.1
$region0: #{tpu_custom_call.1}
  #allocation0 [shape = 'u32[]', space=smem, size = 0x4, offset = 0x4, fixed_abs, tag = 'smem constant byte address 0x4 - core index']
  #allocation1 [shape = 'u32[144,128]{1,0:T(1,128)}', space=vmem, size = 0x12000, scoped, tag = 'internal scratch']
  %s0 = inlined_call_operand.hbm [shape: f32[16,32], index: 0, kind: input, shape index: {}]
  %s1 = inlined_call_operand.hbm [shape: f32[32,32], index: 1, kind: input, shape index: {}]
  %s2 = inlined_call_operand.hbm [shape: f32[16,32], index: 2, kind: output, shape index: {}]
  %s3 = sld [smem:[#allocation0]]
  $region26: #{tpu_custom_call.1} parent=0
    _
  %s5 = ssub.s32 1, %s3
  %s6 = scalar_select 0, %s5, %s3
  $region1: #{tpu_custom_call.1} parent=0
    #allocation2 [shape = 'u8[8192]{0}', space=vmem, size = 0x2000, scoped, tag = 'input window, operand 0, single buffered']
    #allocation3 [shape = 's32[1]{0}', space=sflag, size = 0x4, scoped, tag = 'scoped memory for tpu_custom_call.1']
    #allocation4 [shape = 's32[1]{0}', space=sflag, size = 0x4, scoped, tag = 'scoped memory for tpu_custom_call.1']
    #allocation5 [shape = 'u8[16384]{0}', space=vmem, size = 0x4000, scoped, tag = 'input window, operand 1, single buffered']
    #allocation6 [shape = 's32[1]{0}', space=sflag, size = 0x4, scoped, tag = 'scoped memory for tpu_custom_call.1']
    #allocation7 [shape = 'u8[8192]{0}', space=vmem, size = 0x2000, scoped, tag = 'output window, operand 0, single buffered']
    %7 = vsyncpa [#allocation3], 0
    %8 = vsyncpa [#allocation6], 0
    %9 = vsyncpa [#allocation4], 0
    // Predicated region
    $region2: #{tpu_custom_call.1} parent=1 // pred_check
      _
    $region3: #{tpu_custom_call.1} parent=1 // pred_check_branch
      %11 = sbr.rel (0) target = $region5
    $region4: #{tpu_custom_call.1} parent=1 // pred_region
      %s13 = ssub.s32 256, 256
      %14 = vsyncadd [#allocation3], %s13
      %s15 = sshll.u32 [#allocation2], 4
      %s16 = int_to_ptr.vmem [resolvable:$true] %s15
      %21 = dma.hbm_to_vmem [thread:$0]  %s0, 256, %s16, [#allocation3], 128, 128, 8
    $region5: #{tpu_custom_call.1} parent=1 // pred_fallthru
      _
    // Predicated region
    $region6: #{tpu_custom_call.1} parent=1 // pred_check
      _
    $region7: #{tpu_custom_call.1} parent=1 // pred_check_branch
      %23 = sbr.rel (0) target = $region9
    $region8: #{tpu_custom_call.1} parent=1 // pred_region
      %s25 = ssub.s32 512, 512
      %26 = vsyncadd [#allocation6], %s25
      %s27 = sshll.u32 [#allocation5], 4
      %s28 = int_to_ptr.vmem [resolvable:$true] %s27
      %33 = dma.hbm_to_vmem [thread:$0]  %s1, 512, %s28, [#allocation6], 128, 128, 8
    $region9: #{tpu_custom_call.1} parent=1 // pred_fallthru
      _
    // Predicated region
    $region10: #{tpu_custom_call.1} parent=1 // pred_check
      _
    $region11: #{tpu_custom_call.1} parent=1 // pred_check_branch
      %35 = sbr.rel (0) target = $region13
    $region12: #{tpu_custom_call.1} parent=1 // pred_region
      %36 = dma.done [#allocation3], 256
    $region13: #{tpu_custom_call.1} parent=1 // pred_fallthru
      _
    // Predicated region
    $region14: #{tpu_custom_call.1} parent=1 // pred_check
      _
    $region15: #{tpu_custom_call.1} parent=1 // pred_check_branch
      %38 = sbr.rel (0) target = $region17
    $region16: #{tpu_custom_call.1} parent=1 // pred_region
      %39 = dma.done [#allocation6], 512
    $region17: #{tpu_custom_call.1} parent=1 // pred_fallthru
      _
    %v40 = vld [vmem:[#allocation2] sm:$0xff]
    %v41 = vld [vmem:[#allocation2 + $0x8] sm:$0xff]
    %v42 = vld [vmem:[#allocation5] sm:$0xff]
    %v43 = vld [vmem:[#allocation5 + $0x8] sm:$0xff]
    %v44 = vld [vmem:[#allocation5 + $0x10] sm:$0xff]
    %v45 = vld [vmem:[#allocation5 + $0x18] sm:$0xff]
    %vm46 = vcmask 261120
    %v48 = vsel %vm46, %v40, 0
    %v51 = vsel %vm46, %v41, 0
    %53 = vmatprep.subr.mxu0 0.0
    %54 = vmatpush1.msra.mxu0 %v42
    %55 = vmatprep.subr.mxu0 0.0
    %56 = vmatpush1.msra.mxu0 %v43
    %57 = vmatprep.subr.mxu0 0.0
    %58 = vmatpush1.msra.mxu0 %v44
    %59 = vmatprep.subr.mxu0 0.0
    %60 = vmatpush1.msra.mxu0 %v45
    %61 = vmatprep.subr.mxu0 0.0
    %62 = vmatpush1.msra.mxu0 0.0
    %63 = vmatprep.subr.mxu0 0.0
    %64 = vmatpush1.msra.mxu0 0.0
    %65 = vmatprep.subr.mxu0 0.0
    %66 = vmatpush1.msra.mxu0 0.0
    %67 = vmatprep.subr.mxu0 0.0
    %68 = vmatpush1.msra.mxu0 0.0
    %69 = vmatprep.subr.mxu0 0.0
    %70 = vmatpush1.msra.mxu0 0.0
    %71 = vmatprep.subr.mxu0 0.0
    %72 = vmatpush1.msra.mxu0 0.0
    %73 = vmatprep.subr.mxu0 0.0
    %74 = vmatpush1.msra.mxu0 0.0
    %75 = vmatprep.subr.mxu0 0.0
    %76 = vmatpush1.msra.mxu0 0.0
    %77 = vmatprep.subr.mxu0 0.0
    %78 = vmatpush1.msra.mxu0 0.0
    %79 = vmatprep.subr.mxu0 0.0
    %80 = vmatpush1.msra.mxu0 0.0
    %81 = vmatprep.subr.mxu0 0.0
    %82 = vmatpush1.msra.mxu0 0.0
    %83 = vmatprep.subr.mxu0 0.0
    %84 = vmatpush1.msra.mxu0 0.0
    %85 = vmatprep.subr.mxu0 0.0
    %86 = vmatpush1.msra.mxu0 0.0
    %87 = vmatprep.subr.mxu0 0.0
    %88 = vmatpush1.msra.mxu0 0.0
    %89 = vmatprep.subr.mxu0 0.0
    %90 = vmatpush1.msra.mxu0 0.0
    %91 = vmatprep.subr.mxu0 0.0
    %92 = vmatpush1.msra.mxu0 0.0
    %93 = vmatprep.subr.mxu0 0.0
    %94 = vmatpush1.msra.mxu0 0.0
    %95 = vmatprep.subr.mxu0 0.0
    %96 = vmatpush1.msra.mxu0 0.0
    %97 = vmatprep.subr.mxu0 0.0
    %98 = vmatpush1.msra.mxu0 0.0
    %99 = vmatprep.subr.mxu0 0.0
    %100 = vmatpush1.msra.mxu0 0.0
    %101 = vmatprep.subr.mxu0 0.0
    %102 = vmatpush1.msra.mxu0 0.0
    %103 = vmatprep.subr.mxu0 0.0
    %104 = vmatpush1.msra.mxu0 0.0
    %105 = vmatprep.subr.mxu0 0.0
    %106 = vmatpush1.msra.mxu0 0.0
    %107 = vmatprep.subr.mxu0 0.0
    %108 = vmatpush1.msra.mxu0 0.0
    %109 = vmatprep.subr.mxu0 0.0
    %110 = vmatpush1.msra.mxu0 0.0
    %111 = vmatprep.subr.mxu0 0.0
    %112 = vmatpush1.msra.mxu0 0.0
    %113 = vmatprep.subr.mxu0 0.0
    %114 = vmatpush1.msra.mxu0 0.0
    %115 = vmatprep.subr.mxu0 0.0
    %116 = vmatpush1.msra.mxu0 0.0
    %117 = vmatprep.mubr.f32.mxu0 0.0
    %118 = vmatmul.mubr.f32.gmra.mrb[0].mxu0 %v48
    %v119 = vpop.f32.mrb[0].mxu0
    %v120 = vadd.f32 0.0, %v119
    %v121 = vpop.f32.mrb[0].mxu0
    %122 = vmatprep.mubr.f32.mxu0 0.0
    %123 = vmatmul.mubr.f32.gmra.mrb[0].mxu0 %v51
    %v124 = vpop.f32.mrb[0].mxu0
    %v125 = vadd.f32 0.0, %v124
    %v126 = vpop.f32.mrb[0].mxu0
    %127 = vdwg.mxu0
    %128 = vst.msk [vmem:[#allocation7] sm:$0xff] %vm46, %v120
    %129 = vst.msk [vmem:[#allocation7 + $0x8] sm:$0xff] %vm46, %v125
    // Predicated region
    $region18: #{tpu_custom_call.1} parent=1 // pred_check
      _
    $region19: #{tpu_custom_call.1} parent=1 // pred_check_branch
      %131 = sbr.rel (0) target = $region21
    $region20: #{tpu_custom_call.1} parent=1 // pred_region
      %s133 = ssub.s32 256, 256
      %134 = vsyncadd [#allocation4], %s133
      %s135 = sshll.u32 [#allocation7], 4
      %s136 = int_to_ptr.vmem [resolvable:$true] %s135
      %141 = dma.vmem_to_hbm [thread:$0]  %s136, 256, %s2, [#allocation4], 128, 128, 8
    $region21: #{tpu_custom_call.1} parent=1 // pred_fallthru
      _
    // Predicated region
    $region22: #{tpu_custom_call.1} parent=1 // pred_check
      _
    $region23: #{tpu_custom_call.1} parent=1 // pred_check_branch
      %143 = sbr.rel (0) target = $region25
    $region24: #{tpu_custom_call.1} parent=1 // pred_region
      %144 = dma.done [#allocation4], 256
    $region25: #{tpu_custom_call.1} parent=1 // pred_fallthru
      _
    %145 = vsyncpa [#allocation3], 1
    %146 = vsyncpa [#allocation6], 1
    %147 = vsyncpa [#allocation4], 1

</llo_original>
